<compile_context>
chip_gen: v6e
topology: v6e:2x2x1
jax: 0.10.0
libtpu: 0.0.40
codegen_flags: <defaults>
</compile_context>

<pallas_src>
import jax
import jax.numpy as jnp
from jax.experimental import pallas as pl
from jax.experimental.pallas import tpu as pltpu


def _normalize_kernel(x_ref, scale_ref, bias_ref, o_ref):
    # x_ref: (TM, CHW) streamed block; scale_ref/bias_ref: (1, CHW) resident
    # rows broadcast over the sublane (row) axis. FMA in f32, cast on store.
    x = x_ref[...].astype(jnp.float32)
    o_ref[...] = (x * scale_ref[...] + bias_ref[...]).astype(o_ref.dtype)


def _choose_row_tile(rows, row_bytes, itemsize, target_bytes=2 << 20):
    """Pick a row-tile that (a) satisfies the (8,128) block rule, (b) respects
    sub-32-bit sublane packing (16 rows bf16 / 32 rows int8), (c) targets
    ~2 MiB per block, and (d) yields an even, balanced grid for v7x's two
    TensorCores when the tensor is large enough to split."""
    align = 8 * max(1, 4 // max(itemsize, 1))        # 8 f32 / 16 bf16 / 32 i8
    if rows <= align:
        return rows                                  # block == full dim: legal
    max_tm = (rows // align) * align                 # largest legal tile <= rows
    tm = (target_bytes // max(row_bytes, 1)) // align * align
    tm = max(align, min(tm, max_tm))
    # Prefer >= 2 blocks and an even block count when each block still moves a
    # pipeline-friendly amount of data (dual-TC sharding via "parallel" axis).
    total_bytes = rows * row_bytes
    if total_bytes >= (512 << 10):
        n = -(-rows // tm)                           # ceil-div
        n = max(2, n + (n % 2))                      # at least 2, and even
        tm_bal = -(-(-(-rows // n)) // align) * align  # ceil(rows/n) -> align
        tm = max(align, min(tm_bal, max_tm))
    return tm


def normalize(x, mean, std):
    """(x[:, c] - mean[c]) / std[c] over an NCHW tensor (Pallas TPU kernel)."""
    N, C, H, W = x.shape
    rows, cols = N, C * H * W

    xf = x.reshape(rows, cols)                       # free reshape for NCHW

    # Keep constants and the multiply-add in float32 (no precision loss for
    # bf16/fp16 inputs); cast only the output back to x.dtype in the kernel.
    scale_c = (1.0 / std).astype(jnp.float32)        # (C,)
    bias_c = (-mean / std).astype(jnp.float32)       # (C,)
    scale_row = jnp.repeat(scale_c, H * W).reshape(1, cols)
    bias_row = jnp.repeat(bias_c, H * W).reshape(1, cols)

    tm = _choose_row_tile(rows, cols * x.dtype.itemsize, x.dtype.itemsize)
    grid = (pl.cdiv(rows, tm),)

    # TODO(synk): if the producer emits uint8 pixels, pass them straight in and
    # change only out_shape's dtype — the body already upcasts to f32 (4x less
    # input HBM traffic for this bandwidth-bound op).
    out = pl.pallas_call(
        _normalize_kernel,
        out_shape=jax.ShapeDtypeStruct((rows, cols), x.dtype),
        grid=grid,
        in_specs=[
            pl.BlockSpec((tm, cols), lambda i: (i, 0)),   # x tile (streamed)
            pl.BlockSpec((1, cols), lambda i: (0, 0)),    # scale row (resident)
            pl.BlockSpec((1, cols), lambda i: (0, 0)),    # bias row (resident)
        ],
        out_specs=pl.BlockSpec((tm, cols), lambda i: (i, 0)),
        compiler_params=pltpu.CompilerParams(
            dimension_semantics=("parallel",),
            vmem_limit_bytes=32 << 20,                # headroom on v5e's 16 MiB default
        ),
    )(xf, scale_row, bias_row)

    return out.reshape(N, C, H, W)


if __name__ == "__main__":
    # CIFAR-10 normalization constants from the module's __init__ (3 channels).
    mean = jnp.asarray([0.4914, 0.4822, 0.4465], dtype=jnp.float32)
    std = jnp.asarray([0.2023, 0.1994, 0.201], dtype=jnp.float32)

    key = jax.random.PRNGKey(0)

    def ref_normalize(x):
        return (x - mean[None, :, None, None]) / std[None, :, None, None]

    # Small primary test (single full-block path).
    x1 = jax.random.uniform(key, (2, 3, 16, 16), dtype=jnp.float32)
    out1 = jax.block_until_ready(normalize(x1, mean, std))
    assert out1.shape == x1.shape and out1.dtype == x1.dtype
    assert jnp.allclose(out1, ref_normalize(x1), atol=1e-5, rtol=1e-5)

    # Secondary test exercising the multi-block grid with a ragged last block
    # (rows=20, tm=16 -> grid=2, last block masked) at true CIFAR spatial size.
    k2, _ = jax.random.split(key)
    x2 = jax.random.uniform(k2, (20, 3, 32, 32), dtype=jnp.float32)
    out2 = jax.block_until_ready(normalize(x2, mean, std))
    assert out2.shape == x2.shape and out2.dtype == x2.dtype
    assert jnp.allclose(out2, ref_normalize(x2), atol=1e-5, rtol=1e-5)

    print("KERNEL_OK")
</pallas_src>

<mosaic_0001>
module attributes {stable_mosaic.version = 11 : i64} {
  func.func @_normalize_kernel(%arg0: i32, %arg1: memref<2x768xf32, #tpu.memory_space<vmem>>, %arg2: memref<1x768xf32, #tpu.memory_space<vmem>>, %arg3: memref<1x768xf32, #tpu.memory_space<vmem>>, %arg4: memref<2x768xf32, #tpu.memory_space<vmem>>) attributes {dimension_semantics = [#tpu.dimension_semantics<parallel>], iteration_bounds = array<i64: 1>, scalar_prefetch = 0 : i64, scratch_operands = 0 : i64, tpu.core_type = #tpu.core_type<tc>, window_params = [{transform_indices = @transform_0, window_bounds = array<i64: 2, 768>}, {pipeline_mode = #tpu.pipeline_mode<synchronous>, transform_indices = @transform_1, window_bounds = array<i64: 1, 768>}, {pipeline_mode = #tpu.pipeline_mode<synchronous>, transform_indices = @transform_2, window_bounds = array<i64: 1, 768>}, {transform_indices = @transform_3, window_bounds = array<i64: 2, 768>}]} {
    %c0 = arith.constant 0 : index
    %c0_0 = arith.constant 0 : index
    %0 = vector.load %arg1[%c0, %c0_0] : memref<2x768xf32, #tpu.memory_space<vmem>>, vector<2x768xf32>
    %c0_1 = arith.constant 0 : index
    %c0_2 = arith.constant 0 : index
    %1 = vector.load %arg2[%c0_1, %c0_2] : memref<1x768xf32, #tpu.memory_space<vmem>>, vector<1x768xf32>
    %2 = vector.broadcast %1 : vector<1x768xf32> to vector<2x768xf32>
    %3 = arith.mulf %0, %2 : vector<2x768xf32>
    %c0_3 = arith.constant 0 : index
    %c0_4 = arith.constant 0 : index
    %4 = vector.load %arg3[%c0_3, %c0_4] : memref<1x768xf32, #tpu.memory_space<vmem>>, vector<1x768xf32>
    %5 = vector.broadcast %4 : vector<1x768xf32> to vector<2x768xf32>
    %6 = arith.addf %3, %5 : vector<2x768xf32>
    %c0_5 = arith.constant 0 : index
    %c0_6 = arith.constant 0 : index
    %7 = vector.load %arg4[%c0_5, %c0_6] : memref<2x768xf32, #tpu.memory_space<vmem>>, vector<2x768xf32>
    tpu.vector_store %arg4[%c0_5, %c0_6], %6 {strides = array<i32>} : memref<2x768xf32, #tpu.memory_space<vmem>>, vector<2x768xf32>,
    return
  }
  func.func @transform_0(%arg0: i32) -> (i32, i32) {
    %c0_i32 = arith.constant 0 : i32
    %c0_i32_0 = arith.constant 0 : i32
    return %arg0, %c0_i32 : i32, i32
  }
  func.func @transform_1(%arg0: i32) -> (i32, i32) {
    %c0_i32 = arith.constant 0 : i32
    %c0_i32_0 = arith.constant 0 : i32
    %c0_i32_1 = arith.constant 0 : i32
    return %c0_i32, %c0_i32_0 : i32, i32
  }
  func.func @transform_2(%arg0: i32) -> (i32, i32) {
    %c0_i32 = arith.constant 0 : i32
    %c0_i32_0 = arith.constant 0 : i32
    %c0_i32_1 = arith.constant 0 : i32
    return %c0_i32, %c0_i32_0 : i32, i32
  }
  func.func @transform_3(%arg0: i32) -> (i32, i32) {
    %c0_i32 = arith.constant 0 : i32
    %c0_i32_0 = arith.constant 0 : i32
    return %arg0, %c0_i32 : i32, i32
  }
}

</mosaic_0001>

<llo_original>
// kernel: tpu_custom_call.1
$region0: #{tpu_custom_call.1}
  #allocation0 [shape = 'u32[]', space=smem, size = 0x4, offset = 0x4, fixed_abs, tag = 'smem constant byte address 0x4 - core index']
  #allocation1 [shape = 'u32[144,128]{1,0:T(1,128)}', space=vmem, size = 0x12000, scoped, tag = 'internal scratch']
  %s0 = inlined_call_operand.hbm [shape: f32[2,768], index: 0, kind: input, shape index: {}]
  %s1 = inlined_call_operand.hbm [shape: f32[1,768], index: 1, kind: input, shape index: {}]
  %s2 = inlined_call_operand.hbm [shape: f32[1,768], index: 2, kind: input, shape index: {}]
  %s3 = inlined_call_operand.hbm [shape: f32[2,768], index: 3, kind: output, shape index: {}]
  %s4 = sld [smem:[#allocation0]]
  $region34: #{tpu_custom_call.1} parent=0
    _
  %s6 = ssub.s32 1, %s4
  %s7 = scalar_select 0, %s6, %s4
  $region1: #{tpu_custom_call.1} parent=0
    #allocation2 [shape = 'u8[6144]{0}', space=vmem, size = 0x1800, scoped, tag = 'input window, operand 0, single buffered']
    #allocation3 [shape = 's32[1]{0}', space=sflag, size = 0x4, scoped, tag = 'scoped memory for tpu_custom_call.1']
    #allocation4 [shape = 's32[1]{0}', space=sflag, size = 0x4, scoped, tag = 'scoped memory for tpu_custom_call.1']
    #allocation5 [shape = 'u8[3072]{0}', space=vmem, size = 0xc00, scoped, tag = 'input window, operand 1, single buffered']
    #allocation6 [shape = 's32[1]{0}', space=sflag, size = 0x4, scoped, tag = 'scoped memory for tpu_custom_call.1']
    #allocation7 [shape = 'u8[3072]{0}', space=vmem, size = 0xc00, scoped, tag = 'input window, operand 2, single buffered']
    #allocation8 [shape = 'u8[6144]{0}', space=vmem, size = 0x1800, scoped, tag = 'output window, operand 0, single buffered']
    %8 = vsyncpa [#allocation3], 0
    %9 = vsyncpa [#allocation6], 0
    %10 = vsyncpa [#allocation4], 0
    // Predicated region
    $region2: #{tpu_custom_call.1} parent=1 // pred_check
      _
    $region3: #{tpu_custom_call.1} parent=1 // pred_check_branch
      %12 = sbr.rel (0) target = $region5
    $region4: #{tpu_custom_call.1} parent=1 // pred_region
      %s14 = ssub.s32 192, 192
      %15 = vsyncadd [#allocation3], %s14
      %s17 = sshll.u32 [#allocation2], 4
      %s18 = int_to_ptr.vmem [resolvable:$true] %s17
      %20 = dma.hbm_to_vmem [thread:$0]  %s0, 192, %s18, [#allocation3]
    $region5: #{tpu_custom_call.1} parent=1 // pred_fallthru
      _
    // Predicated region
    $region6: #{tpu_custom_call.1} parent=1 // pred_check
      _
    $region7: #{tpu_custom_call.1} parent=1 // pred_check_branch
      %22 = sbr.rel (0) target = $region9
    $region8: #{tpu_custom_call.1} parent=1 // pred_region
      %s24 = ssub.s32 96, 96
      %25 = vsyncadd [#allocation6], %s24
      %s27 = sshll.u32 [#allocation5], 4
      %s28 = int_to_ptr.vmem [resolvable:$true] %s27
      %30 = dma.hbm_to_vmem [thread:$0]  %s1, 96, %s28, [#allocation6]
    $region9: #{tpu_custom_call.1} parent=1 // pred_fallthru
      _
    // Predicated region
    $region10: #{tpu_custom_call.1} parent=1 // pred_check
      _
    $region11: #{tpu_custom_call.1} parent=1 // pred_check_branch
      %32 = sbr.rel (0) target = $region13
    $region12: #{tpu_custom_call.1} parent=1 // pred_region
      %s34 = ssub.s32 96, 96
      %35 = vsyncadd [#allocation6], %s34
      %s37 = sshll.u32 [#allocation7], 4
      %s38 = int_to_ptr.vmem [resolvable:$true] %s37
      %40 = dma.hbm_to_vmem [thread:$0]  %s2, 96, %s38, [#allocation6]
    $region13: #{tpu_custom_call.1} parent=1 // pred_fallthru
      _
    // Predicated region
    $region14: #{tpu_custom_call.1} parent=1 // pred_check
      _
    $region15: #{tpu_custom_call.1} parent=1 // pred_check_branch
      %42 = sbr.rel (0) target = $region17
    $region16: #{tpu_custom_call.1} parent=1 // pred_region
      %43 = dma.done [#allocation3], 192
    $region17: #{tpu_custom_call.1} parent=1 // pred_fallthru
      _
    // Predicated region
    $region18: #{tpu_custom_call.1} parent=1 // pred_check
      _
    $region19: #{tpu_custom_call.1} parent=1 // pred_check_branch
      %45 = sbr.rel (0) target = $region21
    $region20: #{tpu_custom_call.1} parent=1 // pred_region
      %46 = dma.done [#allocation6], 96
    $region21: #{tpu_custom_call.1} parent=1 // pred_fallthru
      _
    // Predicated region
    $region22: #{tpu_custom_call.1} parent=1 // pred_check
      _
    $region23: #{tpu_custom_call.1} parent=1 // pred_check_branch
      %48 = sbr.rel (0) target = $region25
    $region24: #{tpu_custom_call.1} parent=1 // pred_region
      %49 = dma.done [#allocation6], 96
    $region25: #{tpu_custom_call.1} parent=1 // pred_fallthru
      _
    %v50 = vld [vmem:[#allocation2] sm:$0xff]
    %v51 = vld [vmem:[#allocation2 + $0x8] sm:$0xf]
    %v52 = vld [vmem:[#allocation5] sm:$0x3f]
    %v54 = vlaneseq
    %v55 = vshrl.u32 %v54, 7
    %v56 = vsub.s32 0, %v55
    %v57 = vrot.slane %v52, %v56
    %v58 = vlaneseq
    %v59 = vshrl.u32 %v58, 7
    %v60 = vsub.s32 1, %v59
    %v61 = vrot.slane %v52, %v60
    %v62 = vlaneseq
    %v63 = vshrl.u32 %v62, 7
    %v64 = vsub.s32 2, %v63
    %v65 = vrot.slane %v52, %v64
    %v66 = vlaneseq
    %v67 = vshrl.u32 %v66, 7
    %v68 = vsub.s32 3, %v67
    %v69 = vrot.slane %v52, %v68
    %v70 = vlaneseq
    %v71 = vshrl.u32 %v70, 7
    %v72 = vsub.s32 4, %v71
    %v73 = vrot.slane %v52, %v72
    %v74 = vlaneseq
    %v75 = vshrl.u32 %v74, 7
    %v76 = vsub.s32 5, %v75
    %v77 = vrot.slane %v52, %v76
    %v78 = vcombine.low %v57, %v61
    %v79 = vcombine.low %v65, %v69
    %v81 = vunpack.c.l.s4 1983009808
    %v82 = vunpack.c.0.s8 %v81
    %v83 = vlaneseq
    %v84 = vshrl.u32 %v83, 7
    %v85 = vsub.s32 %v82, %v84
    %v86 = vrot.slane %v78, %v85
    %v88 = vunpack.c.l.s4 1983009808
    %v89 = vunpack.c.0.s8 %v88
    %v90 = vlaneseq
    %v91 = vshrl.u32 %v90, 7
    %v92 = vsub.s32 %v89, %v91
    %v93 = vrot.slane %v79, %v92
    %v94 = vcombine.low %v86, %v93
    %v95 = vcombine.low %v73, %v77
    %v97 = vunpack.c.l.s4 1983009808
    %v98 = vunpack.c.0.s8 %v97
    %v99 = vlaneseq
    %v100 = vshrl.u32 %v99, 7
    %v101 = vsub.s32 %v98, %v100
    %v102 = vrot.slane %v95, %v101
    %v105 = vmul.f32 %v50, %v94
    %v106 = vmul.f32 %v51, %v102
    %v107 = vld [vmem:[#allocation7] sm:$0x3f]
    %v109 = vlaneseq
    %v110 = vshrl.u32 %v109, 7
    %v111 = vsub.s32 0, %v110
    %v112 = vrot.slane %v107, %v111
    %v113 = vlaneseq
    %v114 = vshrl.u32 %v113, 7
    %v115 = vsub.s32 1, %v114
    %v116 = vrot.slane %v107, %v115
    %v117 = vlaneseq
    %v118 = vshrl.u32 %v117, 7
    %v119 = vsub.s32 2, %v118
    %v120 = vrot.slane %v107, %v119
    %v121 = vlaneseq
    %v122 = vshrl.u32 %v121, 7
    %v123 = vsub.s32 3, %v122
    %v124 = vrot.slane %v107, %v123
    %v125 = vlaneseq
    %v126 = vshrl.u32 %v125, 7
    %v127 = vsub.s32 4, %v126
    %v128 = vrot.slane %v107, %v127
    %v129 = vlaneseq
    %v130 = vshrl.u32 %v129, 7
    %v131 = vsub.s32 5, %v130
    %v132 = vrot.slane %v107, %v131
    %v133 = vcombine.low %v112, %v116
    %v134 = vcombine.low %v120, %v124
    %v136 = vunpack.c.l.s4 1983009808
    %v137 = vunpack.c.0.s8 %v136
    %v138 = vlaneseq
    %v139 = vshrl.u32 %v138, 7
    %v140 = vsub.s32 %v137, %v139
    %v141 = vrot.slane %v133, %v140
    %v143 = vunpack.c.l.s4 1983009808
    %v144 = vunpack.c.0.s8 %v143
    %v145 = vlaneseq
    %v146 = vshrl.u32 %v145, 7
    %v147 = vsub.s32 %v144, %v146
    %v148 = vrot.slane %v134, %v147
    %v149 = vcombine.low %v141, %v148
    %v150 = vcombine.low %v128, %v132
    %v152 = vunpack.c.l.s4 1983009808
    %v153 = vunpack.c.0.s8 %v152
    %v154 = vlaneseq
    %v155 = vshrl.u32 %v154, 7
    %v156 = vsub.s32 %v153, %v155
    %v157 = vrot.slane %v150, %v156
    %v160 = vadd.f32 %v105, %v149
    %v161 = vadd.f32 %v106, %v157
    %162 = vst [vmem:[#allocation8] sm:$0xff] %v160
    %163 = vst [vmem:[#allocation8 + $0x8] sm:$0xf] %v161
    // Predicated region
    $region26: #{tpu_custom_call.1} parent=1 // pred_check
      _
    $region27: #{tpu_custom_call.1} parent=1 // pred_check_branch
      %165 = sbr.rel (0) target = $region29
    $region28: #{tpu_custom_call.1} parent=1 // pred_region
      %s167 = ssub.s32 192, 192
      %168 = vsyncadd [#allocation4], %s167
      %s170 = sshll.u32 [#allocation8], 4
      %s171 = int_to_ptr.vmem [resolvable:$true] %s170
      %173 = dma.vmem_to_hbm [thread:$0]  %s171, 192, %s3, [#allocation4]
    $region29: #{tpu_custom_call.1} parent=1 // pred_fallthru
      _
    // Predicated region
    $region30: #{tpu_custom_call.1} parent=1 // pred_check
      _
    $region31: #{tpu_custom_call.1} parent=1 // pred_check_branch
      %175 = sbr.rel (0) target = $region33
    $region32: #{tpu_custom_call.1} parent=1 // pred_region
      %176 = dma.done [#allocation4], 192
    $region33: #{tpu_custom_call.1} parent=1 // pred_fallthru
      _
    %177 = vsyncpa [#allocation3], 1
    %178 = vsyncpa [#allocation6], 1
    %179 = vsyncpa [#allocation4], 1

</llo_original>
